<compile_context>
chip_gen: v7x
topology: tpu7x:2x2x1
jax: 0.10.0
libtpu: 0.0.40
codegen_flags: <defaults>
</compile_context>

<pallas_src>
import functools

import jax
import jax.numpy as jnp
from jax import lax
from jax.experimental import pallas as pl
from jax.experimental.pallas import tpu as pltpu


def _joint_loss_kernel(
    rep_ref,      # (N, D)  full representation, resident across the grid
    xrecon_ref,   # (TM, F) row tile
    xorig_ref,    # (TM, F) row tile
    out_ref,      # (4,)    SMEM output: [loss, closs, recon, zrecon]
    acc_ref,      # (4,)    SMEM scratch: [bce_sum, lse_sum, pos_sum, z_sum]
    rn_ref,       # (N, D)  VMEM scratch: cached normalized rows (bf16 or f32)
    *,
    batch_size,
    temperature,
):
    pid = pl.program_id(0)
    n_rows = rep_ref.shape[0]          # N = 2 * batch_size
    n_feat = xrecon_ref.shape[-1]
    tm = xrecon_ref.shape[0]
    inv_t = jnp.float32(1.0 / temperature)

    # ---- one-time work on the full representation (resident block) -----------
    @pl.when(pid == 0)
    def _init():
        rep = rep_ref[...].astype(jnp.float32)                          # (N, D)
        norm = jnp.sqrt(jnp.sum(rep * rep, axis=-1, keepdims=True))
        rn = rep / jnp.maximum(norm, 1e-8)                              # torch CosineSimilarity eps
        rn_ref[...] = rn.astype(rn_ref.dtype)                           # cache (bf16 on MXU path)

        # Positive logits: pos[g] = <rn[g], rn[(g + bs) % N]>, identical for the
        # two halves, so sum over all rows = 2 * sum over the first half.
        pos_half = jnp.sum(rn[:batch_size, :] * rn[batch_size:, :])
        # Distance-loss numerator: sum_{i<bs} ||z_i - z_j||^2 (f32, no MXU).
        dz = rep[:batch_size, :] - rep[batch_size:, :]

        acc_ref[0] = jnp.float32(0.0)                  # BCE running sum
        acc_ref[1] = jnp.float32(0.0)                  # logsumexp running sum
        acc_ref[2] = (2.0 * pos_half) * inv_t          # sum of positive logits
        acc_ref[3] = jnp.sum(dz * dz)                  # z-distance numerator

    # ---- NT-Xent: logsumexp over off-diagonal logits for this row block ------
    row0 = pl.multiple_of(pid * tm, tm)
    a = rn_ref[pl.ds(row0, tm), :]                     # (TM, D) normalized rows
    b = rn_ref[...]                                    # (N, D)
    # NT-form matmul (contract feature dims of both operands) — no explicit rn.T.
    sim = lax.dot_general(
        a, b, dimension_numbers=(((1,), (1,)), ((), ())),
        preferred_element_type=jnp.float32,
    )                                                  # (TM, N) cosine similarities
    # Constant-shift softmax: logits = sim / T <= 1 / T, so exp((sim - 1)/T) <= 1.
    ex = jnp.exp((sim - 1.0) * inv_t)
    col = lax.broadcasted_iota(jnp.int32, (tm, n_rows), 1)
    grow = lax.broadcasted_iota(jnp.int32, (tm, n_rows), 0) + pid * tm
    ex = jnp.where(col == grow, 0.0, ex)               # drop self-similarity only
    lse = jnp.log(jnp.sum(ex, axis=-1, keepdims=True)) + inv_t     # (TM, 1)
    acc_ref[1] = acc_ref[1] + jnp.sum(lse)

    # ---- BCE (mean reduction; torch clamps the log terms at -100) ------------
    xr = xrecon_ref[...].astype(jnp.float32)           # tile-local cast
    xo = xorig_ref[...].astype(jnp.float32)
    log_p = jnp.maximum(jnp.log(xr), -100.0)
    log_1mp = jnp.maximum(jnp.log(1.0 - xr), -100.0)
    acc_ref[0] = acc_ref[0] + jnp.sum(-(xo * log_p + (1.0 - xo) * log_1mp))

    # ---- finalize -------------------------------------------------------------
    @pl.when(pid == pl.num_programs(0) - 1)
    def _finalize():
        recon = acc_ref[0] / jnp.float32(n_rows * n_feat)
        closs = (acc_ref[1] - acc_ref[2]) / jnp.float32(n_rows)
        zrec = acc_ref[3] / jnp.float32(batch_size)
        out_ref[0] = recon + closs + zrec
        out_ref[1] = closs
        out_ref[2] = recon
        out_ref[3] = zrec


def _pick_block_rows(n_rows, target_bytes=8 * 1024 * 1024):
    """Largest multiple-of-8 divisor of n_rows keeping the (TM, N) f32 sim tile
    near `target_bytes` (bounds the per-step working set for v7x's 64 MiB VMEM)."""
    if n_rows % 8 != 0:
        return n_rows                                  # tiny/odd: single full block
    cap = int(min(512, max(8, target_bytes // (4 * n_rows)), n_rows))
    best, tm = 8, 8
    while tm <= cap:
        if n_rows % tm == 0:
            best = tm
        tm += 8
    return best


def joint_loss(representation, xrecon, xorig, *, batch_size, temperature,
               block_rows=None, mxu_bf16=True):
    n, d = representation.shape
    nx, f = xrecon.shape
    assert n == 2 * batch_size, "representation must be cat([zi, zj], dim=0)"
    assert xorig.shape == (nx, f) and nx == n

    tm = _pick_block_rows(n) if block_rows is None else int(block_rows)
    assert n % tm == 0 and (tm % 8 == 0 or tm == n)
    grid = (n // tm,)

    rn_dtype = jnp.bfloat16 if mxu_bf16 else jnp.float32

    kernel = functools.partial(
        _joint_loss_kernel,
        batch_size=batch_size,
        temperature=float(temperature),
    )

    out = pl.pallas_call(
        kernel,
        out_shape=jax.ShapeDtypeStruct((4,), jnp.float32),
        grid_spec=pltpu.PrefetchScalarGridSpec(
            num_scalar_prefetch=0,
            grid=grid,
            in_specs=[
                # Full representation: constant block index -> fetched once, resident.
                pl.BlockSpec((n, d), lambda i: (0, 0)),
                # xrecon / xorig stream through as row tiles (auto double-buffered).
                pl.BlockSpec((tm, f), lambda i: (i, 0)),
                pl.BlockSpec((tm, f), lambda i: (i, 0)),
            ],
            out_specs=pl.BlockSpec((4,), lambda i: (0,), memory_space=pltpu.SMEM),
            scratch_shapes=[
                pltpu.SMEM((4,), jnp.float32),     # [bce_sum, lse_sum, pos_sum, z_sum]
                pltpu.VMEM((n, d), rn_dtype),      # cached normalized rows
            ],
        ),
        compiler_params=pltpu.CompilerParams(
            dimension_semantics=("arbitrary",),    # shared accumulators across row blocks
            vmem_limit_bytes=48 * 1024 * 1024,     # > default scoped, < v7x physical 64 MiB
        ),
    )(representation, xrecon, xorig)
    return out[0], out[1], out[2], out[3]


def _reference(representation, xrecon, xorig, *, batch_size, temperature):
    rep = representation.astype(jnp.float32)
    xr = xrecon.astype(jnp.float32)
    xo = xorig.astype(jnp.float32)
    n = rep.shape[0]
    bs = batch_size

    log_p = jnp.maximum(jnp.log(xr), -100.0)
    log_1mp = jnp.maximum(jnp.log(1.0 - xr), -100.0)
    recon_loss = jnp.mean(-(xo * log_p + (1.0 - xo) * log_1mp))

    rn = rep / jnp.maximum(jnp.linalg.norm(rep, axis=-1, keepdims=True), 1e-8)
    sim = rn @ rn.T
    logits = sim / temperature
    idx = jnp.arange(n)
    masked = jnp.where(idx[:, None] == idx[None, :], -1e30, logits)
    lse = jax.scipy.special.logsumexp(masked, axis=-1)
    pos = logits[idx, (idx + bs) % n]
    closs = jnp.sum(lse - pos) / n

    zi, zj = rep[:bs], rep[bs:]
    zrecon = jnp.sum((zi - zj) ** 2) / bs
    return recon_loss + closs + zrecon, closs, recon_loss, zrecon


if __name__ == "__main__":
    temperature = 0.1
    # (batch_size, latent_dim, n_features, block_rows):
    #   first config exercises a 2-step grid with accumulators,
    #   second exercises the tiny single-block fallback.
    configs = [
        (64, 32, 64, 64),
        (4, 32, 16, None),
    ]
    key = jax.random.PRNGKey(0)
    for batch_size, latent_dim, n_features, block_rows in configs:
        n = 2 * batch_size
        key, k1, k2, k3 = jax.random.split(key, 4)
        representation = jax.random.normal(k1, (n, latent_dim), dtype=jnp.float32)
        xrecon = jax.nn.sigmoid(jax.random.normal(k2, (n, n_features), dtype=jnp.float32))
        xorig = jax.random.uniform(k3, (n, n_features), dtype=jnp.float32,
                                   minval=0.05, maxval=0.95)

        got = joint_loss(representation, xrecon, xorig,
                         batch_size=batch_size, temperature=temperature,
                         block_rows=block_rows)
        jax.block_until_ready(got)
        want = _reference(representation, xrecon, xorig,
                          batch_size=batch_size, temperature=temperature)

        # loss/closs include the bf16-operand MXU similarity matmul (v6e/v7x fast
        # path) -> ~1e-2-level absolute tolerance; recon/zrecon are pure f32.
        tols = ((2e-2, 2e-2), (2e-2, 2e-2), (1e-3, 1e-3), (1e-3, 1e-3))
        for val, ref_val, (rtol, atol) in zip(got, want, tols):
            assert jnp.isfinite(val), (val, ref_val)
            assert jnp.allclose(val, ref_val, rtol=rtol, atol=atol), (val, ref_val)
    print("KERNEL_OK")
</pallas_src>

<mosaic_0001>
module attributes {stable_mosaic.version = 11 : i64} {
  func.func @_joint_loss_kernel(%arg0: i32, %arg1: memref<128x32xf32, #tpu.memory_space<vmem>>, %arg2: memref<64x64xf32, #tpu.memory_space<vmem>>, %arg3: memref<64x64xf32, #tpu.memory_space<vmem>>, %arg4: memref<4xf32, #tpu.memory_space<smem>>, %arg5: memref<4xf32, #tpu.memory_space<smem>>, %arg6: memref<128x32xbf16, #tpu.memory_space<vmem>>) attributes {dimension_semantics = [#tpu.dimension_semantics<arbitrary>], iteration_bounds = array<i64: 2>, scalar_prefetch = 0 : i64, scratch_operands = 2 : i64, tpu.core_type = #tpu.core_type<tc>, window_params = [{pipeline_mode = #tpu.pipeline_mode<synchronous>, transform_indices = @transform_0, window_bounds = array<i64: 128, 32>}, {transform_indices = @transform_1, window_bounds = array<i64: 64, 64>}, {transform_indices = @transform_2, window_bounds = array<i64: 64, 64>}, {transform_indices = @transform_3, window_bounds = array<i64: 4>}]} {
    %c0_i32 = arith.constant 0 : i32
    %0 = arith.cmpi eq, %arg0, %c0_i32 : i32
    %1 = arith.extui %0 : i1 to i32
    %cst = arith.constant 1.000000e+01 : f32
    %c0_i32_0 = arith.constant 0 : i32
    %2 = arith.cmpi ne, %1, %c0_i32_0 : i32
    scf.if %2 {
      %c0_25 = arith.constant 0 : index
      %c0_26 = arith.constant 0 : index
      %61 = vector.load %arg1[%c0_25, %c0_26] : memref<128x32xf32, #tpu.memory_space<vmem>>, vector<128x32xf32>
      %62 = arith.mulf %61, %61 : vector<128x32xf32>
      %cst_27 = arith.constant dense<0.000000e+00> : vector<128xf32>
      %63 = vector.multi_reduction <add>, %62, %cst_27 [1] : vector<128x32xf32> to vector<128xf32>
      %64 = vector.shape_cast %63 : vector<128xf32> to vector<128x1xf32>
      %65 = math.sqrt %64 : vector<128x1xf32>
      %cst_28 = arith.constant 9.99999993E-9 : f32
      %66 = vector.broadcast %cst_28 : f32 to vector<128x1xf32>
      %67 = arith.maximumf %65, %66 : vector<128x1xf32>
      %68 = vector.broadcast %67 : vector<128x1xf32> to vector<128x32xf32>
      %69 = arith.divf %61, %68 : vector<128x32xf32>
      %70 = arith.truncf %69 : vector<128x32xf32> to vector<128x32xbf16>
      %c0_29 = arith.constant 0 : index
      %c0_30 = arith.constant 0 : index
      %71 = vector.load %arg6[%c0_29, %c0_30] : memref<128x32xbf16, #tpu.memory_space<vmem>>, vector<128x32xbf16>
      tpu.vector_store %arg6[%c0_29, %c0_30], %70 {strides = array<i32>} : memref<128x32xbf16, #tpu.memory_space<vmem>>, vector<128x32xbf16>,
      %72 = vector.extract_strided_slice %69 {offsets = [0, 0], sizes = [64, 32], strides = [1, 1]} : vector<128x32xf32> to vector<64x32xf32>
      %73 = vector.extract_strided_slice %69 {offsets = [64, 0], sizes = [64, 32], strides = [1, 1]} : vector<128x32xf32> to vector<64x32xf32>
      %74 = arith.mulf %72, %73 : vector<64x32xf32>
      %75 = vector.shape_cast %74 : vector<64x32xf32> to vector<1x64x32xf32>
      %cst_31 = arith.constant dense<0.000000e+00> : vector<1xf32>
      %76 = vector.multi_reduction <add>, %75, %cst_31 [1, 2] : vector<1x64x32xf32> to vector<1xf32>
      %77 = vector.shape_cast %76 : vector<1xf32> to vector<1x1x1xf32>
      %78 = vector.extract %77[0, 0, 0] : f32 from vector<1x1x1xf32>
      %79 = vector.extract_strided_slice %61 {offsets = [0, 0], sizes = [64, 32], strides = [1, 1]} : vector<128x32xf32> to vector<64x32xf32>
      %80 = vector.extract_strided_slice %61 {offsets = [64, 0], sizes = [64, 32], strides = [1, 1]} : vector<128x32xf32> to vector<64x32xf32>
      %81 = arith.subf %79, %80 : vector<64x32xf32>
      %cst_32 = arith.constant 0.000000e+00 : f32
      %c0_33 = arith.constant 0 : index
      %82 = memref.load %arg5[%c0_33] : memref<4xf32, #tpu.memory_space<smem>>
      memref.store %cst_32, %arg5[%c0_33] : memref<4xf32, #tpu.memory_space<smem>>
      %cst_34 = arith.constant 0.000000e+00 : f32
      %c1_35 = arith.constant 1 : index
      %83 = memref.load %arg5[%c1_35] : memref<4xf32, #tpu.memory_space<smem>>
      memref.store %cst_34, %arg5[%c1_35] : memref<4xf32, #tpu.memory_space<smem>>
      %cst_36 = arith.constant 2.000000e+00 : f32
      %84 = arith.mulf %cst_36, %78 : f32
      %85 = arith.mulf %84, %cst : f32
      %c2 = arith.constant 2 : index
      %86 = memref.load %arg5[%c2] : memref<4xf32, #tpu.memory_space<smem>>
      memref.store %85, %arg5[%c2] : memref<4xf32, #tpu.memory_space<smem>>
      %87 = arith.mulf %81, %81 : vector<64x32xf32>
      %88 = vector.shape_cast %87 : vector<64x32xf32> to vector<1x64x32xf32>
      %cst_37 = arith.constant dense<0.000000e+00> : vector<1xf32>
      %89 = vector.multi_reduction <add>, %88, %cst_37 [1, 2] : vector<1x64x32xf32> to vector<1xf32>
      %90 = vector.shape_cast %89 : vector<1xf32> to vector<1x1x1xf32>
      %91 = vector.extract %90[0, 0, 0] : f32 from vector<1x1x1xf32>
      %c3 = arith.constant 3 : index
      %92 = memref.load %arg5[%c3] : memref<4xf32, #tpu.memory_space<smem>>
      memref.store %91, %arg5[%c3] : memref<4xf32, #tpu.memory_space<smem>>
    } else {
    }
    %c64_i32 = arith.constant 64 : i32
    %3 = arith.muli %arg0, %c64_i32 : i32
    %4 = tpu.assume_multiple %3, 64 : i32
    %5 = arith.index_cast %4 : i32 to index
    %c0 = arith.constant 0 : index
    %6 = vector.load %arg6[%5, %c0] : memref<128x32xbf16, #tpu.memory_space<vmem>>, vector<64x32xbf16>
    %c0_1 = arith.constant 0 : index
    %c0_2 = arith.constant 0 : index
    %7 = vector.load %arg6[%c0_1, %c0_2] : memref<128x32xbf16, #tpu.memory_space<vmem>>, vector<128x32xbf16>
    %cst_3 = arith.constant dense<0.000000e+00> : vector<64x128xf32>
    %8 = tpu.matmul %6, %7, %cst_3 {dimension_numbers = #tpu.dot_dimension_numbers<[1], [1], [0], [0], [0, 0, 1, 0], [], []>} : vector<64x32xbf16>, vector<128x32xbf16>, vector<64x128xf32> -> vector<64x128xf32>
    %cst_4 = arith.constant 1.000000e+00 : f32
    %9 = vector.broadcast %cst_4 : f32 to vector<64x128xf32>
    %10 = arith.subf %8, %9 : vector<64x128xf32>
    %cst_5 = arith.constant 1.000000e+01 : f32
    %11 = vector.broadcast %cst_5 : f32 to vector<64x128xf32>
    %12 = arith.mulf %10, %11 : vector<64x128xf32>
    %13 = math.exp %12 : vector<64x128xf32>
    %14 = tpu.iota {dimensions = array<i32: 1>} : vector<64x128xi32>
    %15 = tpu.iota {dimensions = array<i32: 0>} : vector<64x128xi32>
    %c64_i32_6 = arith.constant 64 : i32
    %16 = arith.muli %arg0, %c64_i32_6 : i32
    %17 = vector.broadcast %16 : i32 to vector<64x128xi32>
    %18 = arith.addi %15, %17 : vector<64x128xi32>
    %19 = arith.cmpi eq, %14, %18 : vector<64x128xi32>
    %cst_7 = arith.constant 0.000000e+00 : f32
    %20 = vector.broadcast %cst_7 : f32 to vector<64x128xf32>
    %21 = arith.select %19, %20, %13 : vector<64x128xi1>, vector<64x128xf32>
    %cst_8 = arith.constant dense<0.000000e+00> : vector<64xf32>
    %22 = vector.multi_reduction <add>, %21, %cst_8 [1] : vector<64x128xf32> to vector<64xf32>
    %23 = vector.shape_cast %22 : vector<64xf32> to vector<64x1xf32>
    %24 = math.log %23 : vector<64x1xf32>
    %cst_9 = arith.constant 1.000000e+01 : f32
    %25 = vector.broadcast %cst_9 : f32 to vector<64x1xf32>
    %26 = arith.addf %24, %25 : vector<64x1xf32>
    %c1 = arith.constant 1 : index
    %27 = memref.load %arg5[%c1] : memref<4xf32, #tpu.memory_space<smem>>
    %28 = vector.shape_cast %26 : vector<64x1xf32> to vector<1x64x1xf32>
    %cst_10 = arith.constant dense<0.000000e+00> : vector<1xf32>
    %29 = vector.multi_reduction <add>, %28, %cst_10 [1, 2] : vector<1x64x1xf32> to vector<1xf32>
    %30 = vector.shape_cast %29 : vector<1xf32> to vector<1x1x1xf32>
    %31 = vector.extract %30[0, 0, 0] : f32 from vector<1x1x1xf32>
    %32 = arith.addf %27, %31 : f32
    %c1_11 = arith.constant 1 : index
    %33 = memref.load %arg5[%c1_11] : memref<4xf32, #tpu.memory_space<smem>>
    memref.store %32, %arg5[%c1_11] : memref<4xf32, #tpu.memory_space<smem>>
    %c0_12 = arith.constant 0 : index
    %c0_13 = arith.constant 0 : index
    %34 = vector.load %arg2[%c0_12, %c0_13] : memref<64x64xf32, #tpu.memory_space<vmem>>, vector<64x64xf32>
    %c0_14 = arith.constant 0 : index
    %c0_15 = arith.constant 0 : index
    %35 = vector.load %arg3[%c0_14, %c0_15] : memref<64x64xf32, #tpu.memory_space<vmem>>, vector<64x64xf32>
    %36 = math.log %34 : vector<64x64xf32>
    %cst_16 = arith.constant -1.000000e+02 : f32
    %37 = vector.broadcast %cst_16 : f32 to vector<64x64xf32>
    %38 = arith.maximumf %36, %37 : vector<64x64xf32>
    %cst_17 = arith.constant 1.000000e+00 : f32
    %39 = vector.broadcast %cst_17 : f32 to vector<64x64xf32>
    %40 = arith.subf %39, %34 : vector<64x64xf32>
    %41 = math.log %40 : vector<64x64xf32>
    %cst_18 = arith.constant -1.000000e+02 : f32
    %42 = vector.broadcast %cst_18 : f32 to vector<64x64xf32>
    %43 = arith.maximumf %41, %42 : vector<64x64xf32>
    %c0_19 = arith.constant 0 : index
    %44 = memref.load %arg5[%c0_19] : memref<4xf32, #tpu.memory_space<smem>>
    %45 = arith.mulf %35, %38 : vector<64x64xf32>
    %cst_20 = arith.constant 1.000000e+00 : f32
    %46 = vector.broadcast %cst_20 : f32 to vector<64x64xf32>
    %47 = arith.subf %46, %35 : vector<64x64xf32>
    %48 = arith.mulf %47, %43 : vector<64x64xf32>
    %49 = arith.addf %45, %48 : vector<64x64xf32>
    %cst_21 = arith.constant 0.000000e+00 : f32
    %50 = vector.broadcast %cst_21 : f32 to vector<64x64xf32>
    %51 = arith.subf %50, %49 : vector<64x64xf32>
    %52 = vector.shape_cast %51 : vector<64x64xf32> to vector<1x64x64xf32>
    %cst_22 = arith.constant dense<0.000000e+00> : vector<1xf32>
    %53 = vector.multi_reduction <add>, %52, %cst_22 [1, 2] : vector<1x64x64xf32> to vector<1xf32>
    %54 = vector.shape_cast %53 : vector<1xf32> to vector<1x1x1xf32>
    %55 = vector.extract %54[0, 0, 0] : f32 from vector<1x1x1xf32>
    %56 = arith.addf %44, %55 : f32
    %c0_23 = arith.constant 0 : index
    %57 = memref.load %arg5[%c0_23] : memref<4xf32, #tpu.memory_space<smem>>
    memref.store %56, %arg5[%c0_23] : memref<4xf32, #tpu.memory_space<smem>>
    %c1_i32 = arith.constant 1 : i32
    %58 = arith.cmpi eq, %arg0, %c1_i32 : i32
    %59 = arith.extui %58 : i1 to i32
    %c0_i32_24 = arith.constant 0 : i32
    %60 = arith.cmpi ne, %59, %c0_i32_24 : i32
    scf.if %60 {
      %c0_25 = arith.constant 0 : index
      %61 = memref.load %arg5[%c0_25] : memref<4xf32, #tpu.memory_space<smem>>
      %cst_26 = arith.constant 8.192000e+03 : f32
      %62 = arith.divf %61, %cst_26 : f32
      %c1_27 = arith.constant 1 : index
      %63 = memref.load %arg5[%c1_27] : memref<4xf32, #tpu.memory_space<smem>>
      %c2 = arith.constant 2 : index
      %64 = memref.load %arg5[%c2] : memref<4xf32, #tpu.memory_space<smem>>
      %65 = arith.subf %63, %64 : f32
      %cst_28 = arith.constant 1.280000e+02 : f32
      %66 = arith.divf %65, %cst_28 : f32
      %c3 = arith.constant 3 : index
      %67 = memref.load %arg5[%c3] : memref<4xf32, #tpu.memory_space<smem>>
      %cst_29 = arith.constant 6.400000e+01 : f32
      %68 = arith.divf %67, %cst_29 : f32
      %69 = arith.addf %62, %66 : f32
      %70 = arith.addf %69, %68 : f32
      %c0_30 = arith.constant 0 : index
      %71 = memref.load %arg4[%c0_30] : memref<4xf32, #tpu.memory_space<smem>>
      memref.store %70, %arg4[%c0_30] : memref<4xf32, #tpu.memory_space<smem>>
      %c1_31 = arith.constant 1 : index
      %72 = memref.load %arg4[%c1_31] : memref<4xf32, #tpu.memory_space<smem>>
      memref.store %66, %arg4[%c1_31] : memref<4xf32, #tpu.memory_space<smem>>
      %c2_32 = arith.constant 2 : index
      %73 = memref.load %arg4[%c2_32] : memref<4xf32, #tpu.memory_space<smem>>
      memref.store %62, %arg4[%c2_32] : memref<4xf32, #tpu.memory_space<smem>>
      %c3_33 = arith.constant 3 : index
      %74 = memref.load %arg4[%c3_33] : memref<4xf32, #tpu.memory_space<smem>>
      memref.store %68, %arg4[%c3_33] : memref<4xf32, #tpu.memory_space<smem>>
    } else {
    }
    return
  }
  func.func @transform_0(%arg0: i32) -> (i32, i32) {
    %c0_i32 = arith.constant 0 : i32
    %c0_i32_0 = arith.constant 0 : i32
    %c0_i32_1 = arith.constant 0 : i32
    return %c0_i32, %c0_i32_0 : i32, i32
  }
  func.func @transform_1(%arg0: i32) -> (i32, i32) {
    %c0_i32 = arith.constant 0 : i32
    %c0_i32_0 = arith.constant 0 : i32
    return %arg0, %c0_i32 : i32, i32
  }
  func.func @transform_2(%arg0: i32) -> (i32, i32) {
    %c0_i32 = arith.constant 0 : i32
    %c0_i32_0 = arith.constant 0 : i32
    return %arg0, %c0_i32 : i32, i32
  }
  func.func @transform_3(%arg0: i32) -> i32 {
    %c0_i32 = arith.constant 0 : i32
    %c0_i32_0 = arith.constant 0 : i32
    return %c0_i32 : i32
  }
}

</mosaic_0001>

<llo_original>
// kernel: tpu_custom_call.1
$region0: #{tpu_custom_call.1}
  #allocation0 [shape = 'u32[]', space=smem, size = 0x4, offset = 0x4, fixed_abs, tag = 'smem constant byte address 0x4 - core index']
  #allocation1 [shape = 'u32[144,128]{1,0:T(1,128)}', space=vmem, size = 0x12000, scoped, tag = 'internal scratch']
  #allocation2 [shape = 'f32[4]{0:T(128)}', space=smem, size = 0x200, scoped, tag = 'scratch operand']
  #allocation3 [shape = 'bf16[128,32]{1,0:T(16,128)(2,1)}', space=vmem, size = 0x8000, scoped, tag = 'scratch operand']
  %s0 = inlined_call_operand.vmem [shape: f32[128,32], index: 0, kind: input, shape index: {}]
  %s1 = inlined_call_operand.vmem [shape: f32[128,64], index: 1, kind: input, shape index: {}]
  %s2 = inlined_call_operand.vmem [shape: f32[128,64], index: 2, kind: input, shape index: {}]
  %s3 = inlined_call_operand.hbm [shape: f32[4], index: 3, kind: output, shape index: {}]
  %s4 = sld [smem:[#allocation0]]
  $region53: #{tpu_custom_call.1} parent=0
    _
  %s6 = ssub.s32 1, %s4
  %s7 = scalar_select 0, %s6, %s4
  $region1: #{tpu_custom_call.1} parent=0
    #allocation4 [shape = 'u8[512]{0}', space=smem, size = 0x200, scoped, tag = 'output window, operand 0, single buffered']
    #allocation5 [shape = 's32[2]{0}', space=sflag, size = 0x8, scoped, tag = 'scoped memory for tpu_custom_call.1']
    %8 = vsyncpa [#allocation5], 0
    loop: start=0, step=1, limit=4
    $region2: #{tpu_custom_call.1} parent=1 // loop_pre_header
      _
    $region3: #{tpu_custom_call.1} parent=1 // loop_header
      %s10 = sphi 0, %s14
      %p11 = scmp.ge.s32.totalorder %s10, 4
      %s18 = sphi 0, %s18
      %s20 = sphi 0, %s18
      %s21 = sphi 0, %s20
      %s35 = sphi 0, %s21
      %s41 = sphi 0, %s43
      %s44 = sphi 0, %s41
      %s45 = sphi 0, %s44
      %s61 = sphi 0, %s45
      %s67 = sphi 0, %s69
      %s70 = sphi 0, %s67
      %s71 = sphi 0, %s70
      %s87 = sphi 0, %s71
      %s91 = sphi 0, %s91
      %s93 = sphi 0, %s91
      %s94 = sphi 0, %s93
      %s108 = sphi 0, %s94
    $region4: #{tpu_custom_call.1} parent=1 // loop_header_branch
      %13 = sbr.rel (%p11) target = $region8
    $region5: #{tpu_custom_call.1} parent=1 // loop_body
      %s15 = ssub.s32 %s10, 1
      %s16 = ssub.s32 %s10, 2
      %s17 = sadd.s32 %s10, 1
      %s19 = sadd.s32 %s18, 1
      %p22 = scmp.eq.s32.totalorder %s10, 1
      %p23 = scmp.ne.s32.totalorder %s18, %s20
      %p24 = scmp.eq.s32.totalorder %s10, 0
      %p25 = por %p23, %p24
      %p26 = scmp.ne.s32.totalorder %s18, %s20
      %p27 = scmp.eq.s32.totalorder %s15, 1
      %p28 = por %p26, %p27
      %p29 = scmp.ne.s32.totalorder %s20, %s21
      %p30 = scmp.eq.s32.totalorder %s15, 0
      %p31 = por %p29, %p30
      %p32 = scmp.ne.s32.totalorder %s20, %s21
      %p33 = scmp.eq.s32.totalorder %s16, 1
      %p34 = por %p32, %p33
      %p36 = scmp.ne.s32.totalorder %s21, %s35
      %p37 = scmp.eq.s32.totalorder %s16, 0
      %p38 = por %p36, %p37
      %s39 = ssub.s32 %s10, %s17
      %p40 = scmp.eq.s32.totalorder %s39, 0
      %s42 = sadd.s32 %s41, 1
      %s43 = scalar_select %p40, %s41, %s42
      %p46 = pneg %p40
      %p47 = scmp.eq.s32.totalorder %s10, 1
      %p48 = por %p46, %p47
      %p49 = scmp.ne.s32.totalorder %s41, %s44
      %p50 = scmp.eq.s32.totalorder %s10, 0
      %p51 = por %p49, %p50
      %p52 = scmp.ne.s32.totalorder %s41, %s44
      %p53 = scmp.eq.s32.totalorder %s15, 1
      %p54 = por %p52, %p53
      %p55 = scmp.ne.s32.totalorder %s44, %s45
      %p56 = scmp.eq.s32.totalorder %s15, 0
      %p57 = por %p55, %p56
      %p58 = scmp.ne.s32.totalorder %s44, %s45
      %p59 = scmp.eq.s32.totalorder %s16, 1
      %p60 = por %p58, %p59
      %p62 = scmp.ne.s32.totalorder %s45, %s61
      %p63 = scmp.eq.s32.totalorder %s16, 0
      %p64 = por %p62, %p63
      %s65 = ssub.s32 %s10, %s17
      %p66 = scmp.eq.s32.totalorder %s65, 0
      %s68 = sadd.s32 %s67, 1
      %s69 = scalar_select %p66, %s67, %s68
      %p72 = pneg %p66
      %p73 = scmp.eq.s32.totalorder %s10, 1
      %p74 = por %p72, %p73
      %p75 = scmp.ne.s32.totalorder %s67, %s70
      %p76 = scmp.eq.s32.totalorder %s10, 0
      %p77 = por %p75, %p76
      %p78 = scmp.ne.s32.totalorder %s67, %s70
      %p79 = scmp.eq.s32.totalorder %s15, 1
      %p80 = por %p78, %p79
      %p81 = scmp.ne.s32.totalorder %s70, %s71
      %p82 = scmp.eq.s32.totalorder %s15, 0
      %p83 = por %p81, %p82
      %p84 = scmp.ne.s32.totalorder %s70, %s71
      %p85 = scmp.eq.s32.totalorder %s16, 1
      %p86 = por %p84, %p85
      %p88 = scmp.ne.s32.totalorder %s71, %s87
      %p89 = scmp.eq.s32.totalorder %s16, 0
      %p90 = por %p88, %p89
      %s92 = sadd.s32 %s91, 1
      %p95 = scmp.eq.s32.totalorder %s10, 1
      %p96 = scmp.ne.s32.totalorder %s91, %s93
      %p97 = scmp.eq.s32.totalorder %s10, 0
      %p98 = por %p96, %p97
      %p99 = scmp.ne.s32.totalorder %s91, %s93
      %p100 = scmp.eq.s32.totalorder %s15, 1
      %p101 = por %p99, %p100
      %p102 = scmp.ne.s32.totalorder %s93, %s94
      %p103 = scmp.eq.s32.totalorder %s15, 0
      %p104 = por %p102, %p103
      %p105 = scmp.ne.s32.totalorder %s93, %s94
      %p106 = scmp.eq.s32.totalorder %s16, 1
      %p107 = por %p105, %p106
      %p109 = scmp.ne.s32.totalorder %s94, %s108
      %p110 = scmp.eq.s32.totalorder %s16, 0
      %p111 = por %p109, %p110
      %p112 = scmp.le.s32.totalorder 1, %s10
      %p113 = scmp.lt.s32.totalorder %s10, 3
      %p114 = pnand %p112, %p113
      %p115 = pneg %p114
      // Predicated region
      $region9: #{tpu_custom_call.1} parent=5 // pred_check
        _
      $region10: #{tpu_custom_call.1} parent=5 // pred_check_branch
        %117 = sbr.rel (%p114) target = $region12
      $region11: #{tpu_custom_call.1} parent=5 // pred_region
        %s118 = ssub.s32 %s10, 1
        // Predicated region
        $region13: #{tpu_custom_call.1} parent=11 // pred_check
          %p119 = pneg %p31
        $region14: #{tpu_custom_call.1} parent=11 // pred_check_branch
          %121 = sbr.rel (%p119) target = $region16
        $region15: #{tpu_custom_call.1} parent=11 // pred_region
          _
        $region16: #{tpu_custom_call.1} parent=11 // pred_fallthru
          _
      $region12: #{tpu_custom_call.1} parent=5 // pred_fallthru
        _
      %p122 = scmp.lt.s32.totalorder %s10, 2
      // Predicated region
      $region17: #{tpu_custom_call.1} parent=5 // pred_check
        %p123 = pneg %p122
      $region18: #{tpu_custom_call.1} parent=5 // pred_check_branch
        %125 = sbr.rel (%p123) target = $region20
      $region19: #{tpu_custom_call.1} parent=5 // pred_region
        // Predicated region
        $region21: #{tpu_custom_call.1} parent=19 // pred_check
          %p126 = pneg %p51
        $region22: #{tpu_custom_call.1} parent=19 // pred_check_branch
          %128 = sbr.rel (%p126) target = $region24
        $region23: #{tpu_custom_call.1} parent=19 // pred_region
          %s129 = smul.u32 8, %s10
          %p130 = scmp.lt.s32.totalorder %s129, 15
          %s131 = scalar_select %p130, %s129, 15
          %s132 = smul.addr %s131, 8
          %s133 = scalar_lea.vmem %s1, %s132
          %s134 = smul.u32 8, %s10
        $region24: #{tpu_custom_call.1} parent=19 // pred_fallthru
          _
        // Predicated region
        $region25: #{tpu_custom_call.1} parent=19 // pred_check
          %p135 = pneg %p77
        $region26: #{tpu_custom_call.1} parent=19 // pred_check_branch
          %137 = sbr.rel (%p135) target = $region28
        $region27: #{tpu_custom_call.1} parent=19 // pred_region
          %s138 = smul.u32 8, %s10
          %p139 = scmp.lt.s32.totalorder %s138, 15
          %s140 = scalar_select %p139, %s138, 15
          %s141 = smul.addr %s140, 8
          %s142 = scalar_lea.vmem %s2, %s141
          %s143 = smul.u32 8, %s10
        $region28: #{tpu_custom_call.1} parent=19 // pred_fallthru
          _
      $region20: #{tpu_custom_call.1} parent=5 // pred_fallthru
        _
      %p144 = scmp.le.s32.totalorder 1, %s10
      %p145 = scmp.lt.s32.totalorder %s10, 3
      %p146 = pnand %p144, %p145
      %p147 = pneg %p146
      // Predicated region
      $region29: #{tpu_custom_call.1} parent=5 // pred_check
        _
      $region30: #{tpu_custom_call.1} parent=5 // pred_check_branch
        %149 = sbr.rel (%p146) target = $region32
      $region31: #{tpu_custom_call.1} parent=5 // pred_region
        %s150 = ssub.s32 %s10, 1
        %p151 = pneg %p31
        %p152 = pneg %p28
        %s153 = smul.u32 8, %s15
        %p154 = scmp.lt.s32.totalorder %s153, 15
        %s155 = scalar_select %p154, %s153, 15
        %s156 = smul.addr %s155, 8
        %s157 = scalar_lea.vmem %s1, %s156
        %p158 = pneg %p57
        %p159 = pneg %p54
        %s160 = smul.u32 8, %s15
        %p161 = scmp.lt.s32.totalorder %s160, 15
        %s162 = scalar_select %p161, %s160, 15
        %s163 = smul.addr %s162, 8
        %s164 = scalar_lea.vmem %s2, %s163
        %p165 = pneg %p83
        %p166 = pneg %p80
        %p167 = pneg %p104
        %p168 = pneg %p101
        %s169 = smul.u32 8, %s15
        %p170 = scmp.lt.s32.totalorder %s169, 15
        %s171 = scalar_select %p170, %s169, 15
        %s172 = smul.addr %s171, 8
        %s173 = scalar_lea.vmem %s1, %s172
        %s174 = smul.u32 8, %s15
        %s175 = smul.u32 8, %s15
        %p176 = scmp.lt.s32.totalorder %s175, 15
        %s177 = scalar_select %p176, %s175, 15
        %s178 = smul.addr %s177, 8
        %s179 = scalar_lea.vmem %s2, %s178
        %s180 = smul.u32 8, %s15
        %p182 = scmp.eq.s32.totalorder %s15, 0
        // Predicated region
        $region33: #{tpu_custom_call.1} parent=31 // pred_check
          %p183 = pneg %p182
        $region34: #{tpu_custom_call.1} parent=31 // pred_check_branch
          %185 = sbr.rel (%p183) target = $region36
        $region35: #{tpu_custom_call.1} parent=31 // pred_region
          %v186 = vld [vmem:[%s0] sm:$0xff]
          %v187 = vld [vmem:[%s0 + $0x8] sm:$0xff]
          %v188 = vld [vmem:[%s0 + $0x10] sm:$0xff]
          %v189 = vld [vmem:[%s0 + $0x18] sm:$0xff]
          %v190 = vld [vmem:[%s0 + $0x20] sm:$0xff]
          %v191 = vld [vmem:[%s0 + $0x28] sm:$0xff]
          %v192 = vld [vmem:[%s0 + $0x30] sm:$0xff]
          %v193 = vld [vmem:[%s0 + $0x38] sm:$0xff]
          %v194 = vld [vmem:[%s0 + $0x40] sm:$0xff]
          %v195 = vld [vmem:[%s0 + $0x48] sm:$0xff]
          %v196 = vld [vmem:[%s0 + $0x50] sm:$0xff]
          %v197 = vld [vmem:[%s0 + $0x58] sm:$0xff]
          %v198 = vld [vmem:[%s0 + $0x60] sm:$0xff]
          %v199 = vld [vmem:[%s0 + $0x68] sm:$0xff]
          %v200 = vld [vmem:[%s0 + $0x70] sm:$0xff]
          %v201 = vld [vmem:[%s0 + $0x78] sm:$0xff]
          %v202 = vmul.f32 %v186, %v186
          %v203 = vmul.f32 %v187, %v187
          %v204 = vmul.f32 %v188, %v188
          %v205 = vmul.f32 %v189, %v189
          %v206 = vmul.f32 %v190, %v190
          %v207 = vmul.f32 %v191, %v191
          %v208 = vmul.f32 %v192, %v192
          %v209 = vmul.f32 %v193, %v193
          %v210 = vmul.f32 %v194, %v194
          %v211 = vmul.f32 %v195, %v195
          %v212 = vmul.f32 %v196, %v196
          %v213 = vmul.f32 %v197, %v197
          %v214 = vmul.f32 %v198, %v198
          %v215 = vmul.f32 %v199, %v199
          %v216 = vmul.f32 %v200, %v200
          %v217 = vmul.f32 %v201, %v201
          %vm218 = vcmask 261120
          %v219 = vsel %vm218, %v202, 0.0
          %220 = vadd.xlane.f32.xlu0 %v219
          %v221 = vpop.xlane.xlu0 %220
          %v222 = vsel %vm218, %v203, 0.0
          %223 = vadd.xlane.f32.xlu0 %v222
          %v224 = vpop.xlane.xlu0 %223
          %v225 = vsel %vm218, %v204, 0.0
          %226 = vadd.xlane.f32.xlu0 %v225
          %v227 = vpop.xlane.xlu0 %226
          %v228 = vsel %vm218, %v205, 0.0
          %229 = vadd.xlane.f32.xlu0 %v228
          %v230 = vpop.xlane.xlu0 %229
          %v231 = vsel %vm218, %v206, 0.0
          %232 = vadd.xlane.f32.xlu0 %v231
          %v233 = vpop.xlane.xlu0 %232
          %v234 = vsel %vm218, %v207, 0.0
          %235 = vadd.xlane.f32.xlu0 %v234
          %v236 = vpop.xlane.xlu0 %235
          %v237 = vsel %vm218, %v208, 0.0
          %238 = vadd.xlane.f32.xlu0 %v237
          %v239 = vpop.xlane.xlu0 %238
          %v240 = vsel %vm218, %v209, 0.0
          %241 = vadd.xlane.f32.xlu0 %v240
          %v242 = vpop.xlane.xlu0 %241
          %v243 = vsel %vm218, %v210, 0.0
          %244 = vadd.xlane.f32.xlu0 %v243
          %v245 = vpop.xlane.xlu0 %244
          %v246 = vsel %vm218, %v211, 0.0
          %247 = vadd.xlane.f32.xlu0 %v246
          %v248 = vpop.xlane.xlu0 %247
          %v249 = vsel %vm218, %v212, 0.0
          %250 = vadd.xlane.f32.xlu0 %v249
          %v251 = vpop.xlane.xlu0 %250
          %v252 = vsel %vm218, %v213, 0.0
          %253 = vadd.xlane.f32.xlu0 %v252
          %v254 = vpop.xlane.xlu0 %253
          %v255 = vsel %vm218, %v214, 0.0
          %256 = vadd.xlane.f32.xlu0 %v255
          %v257 = vpop.xlane.xlu0 %256
          %v258 = vsel %vm218, %v215, 0.0
          %259 = vadd.xlane.f32.xlu0 %v258
          %v260 = vpop.xlane.xlu0 %259
          %v261 = vsel %vm218, %v216, 0.0
          %262 = vadd.xlane.f32.xlu0 %v261
          %v263 = vpop.xlane.xlu0 %262
          %v264 = vsel %vm218, %v217, 0.0
          %265 = vadd.xlane.f32.xlu0 %v264
          %v266 = vpop.xlane.xlu0 %265
          %v267 = vrsqrt.pop %v221
          %v268 = vmul.f32 %v221, %v267
          %vm269 = vcmp.eq.f32.partialorder %v221, inf
          %v270 = vsel %vm269, %v221, %v268
          %vm271 = vcmp.eq.f32.partialorder %v221, 0.0
          %v272 = vand.u32 %v221, 2147483648
          %v273 = vsel %vm271, %v272, %v270
          %v274 = vrsqrt.pop %v224
          %v275 = vmul.f32 %v224, %v274
          %vm276 = vcmp.eq.f32.partialorder %v224, inf
          %v277 = vsel %vm276, %v224, %v275
          %vm278 = vcmp.eq.f32.partialorder %v224, 0.0
          %v279 = vand.u32 %v224, 2147483648
          %v280 = vsel %vm278, %v279, %v277
          %v281 = vrsqrt.pop %v227
          %v282 = vmul.f32 %v227, %v281
          %vm283 = vcmp.eq.f32.partialorder %v227, inf
          %v284 = vsel %vm283, %v227, %v282
          %vm285 = vcmp.eq.f32.partialorder %v227, 0.0
          %v286 = vand.u32 %v227, 2147483648
          %v287 = vsel %vm285, %v286, %v284
          %v288 = vrsqrt.pop %v230
          %v289 = vmul.f32 %v230, %v288
          %vm290 = vcmp.eq.f32.partialorder %v230, inf
          %v291 = vsel %vm290, %v230, %v289
          %vm292 = vcmp.eq.f32.partialorder %v230, 0.0
          %v293 = vand.u32 %v230, 2147483648
          %v294 = vsel %vm292, %v293, %v291
          %v295 = vrsqrt.pop %v233
          %v296 = vmul.f32 %v233, %v295
          %vm297 = vcmp.eq.f32.partialorder %v233, inf
          %v298 = vsel %vm297, %v233, %v296
          %vm299 = vcmp.eq.f32.partialorder %v233, 0.0
          %v300 = vand.u32 %v233, 2147483648
          %v301 = vsel %vm299, %v300, %v298
          %v302 = vrsqrt.pop %v236
          %v303 = vmul.f32 %v236, %v302
          %vm304 = vcmp.eq.f32.partialorder %v236, inf
          %v305 = vsel %vm304, %v236, %v303
          %vm306 = vcmp.eq.f32.partialorder %v236, 0.0
          %v307 = vand.u32 %v236, 2147483648
          %v308 = vsel %vm306, %v307, %v305
          %v309 = vrsqrt.pop %v239
          %v310 = vmul.f32 %v239, %v309
          %vm311 = vcmp.eq.f32.partialorder %v239, inf
          %v312 = vsel %vm311, %v239, %v310
          %vm313 = vcmp.eq.f32.partialorder %v239, 0.0
          %v314 = vand.u32 %v239, 2147483648
          %v315 = vsel %vm313, %v314, %v312
          %v316 = vrsqrt.pop %v242
          %v317 = vmul.f32 %v242, %v316
          %vm318 = vcmp.eq.f32.partialorder %v242, inf
          %v319 = vsel %vm318, %v242, %v317
          %vm320 = vcmp.eq.f32.partialorder %v242, 0.0
          %v321 = vand.u32 %v242, 2147483648
          %v322 = vsel %vm320, %v321, %v319
          %v323 = vrsqrt.pop %v245
          %v324 = vmul.f32 %v245, %v323
          %vm325 = vcmp.eq.f32.partialorder %v245, inf
          %v326 = vsel %vm325, %v245, %v324
          %vm327 = vcmp.eq.f32.partialorder %v245, 0.0
          %v328 = vand.u32 %v245, 2147483648
          %v329 = vsel %vm327, %v328, %v326
          %v330 = vrsqrt.pop %v248
          %v331 = vmul.f32 %v248, %v330
          %vm332 = vcmp.eq.f32.partialorder %v248, inf
          %v333 = vsel %vm332, %v248, %v331
          %vm334 = vcmp.eq.f32.partialorder %v248, 0.0
          %v335 = vand.u32 %v248, 2147483648
          %v336 = vsel %vm334, %v335, %v333
          %v337 = vrsqrt.pop %v251
          %v338 = vmul.f32 %v251, %v337
          %vm339 = vcmp.eq.f32.partialorder %v251, inf
          %v340 = vsel %vm339, %v251, %v338
          %vm341 = vcmp.eq.f32.partialorder %v251, 0.0
          %v342 = vand.u32 %v251, 2147483648
          %v343 = vsel %vm341, %v342, %v340
          %v344 = vrsqrt.pop %v254
          %v345 = vmul.f32 %v254, %v344
          %vm346 = vcmp.eq.f32.partialorder %v254, inf
          %v347 = vsel %vm346, %v254, %v345
          %vm348 = vcmp.eq.f32.partialorder %v254, 0.0
          %v349 = vand.u32 %v254, 2147483648
          %v350 = vsel %vm348, %v349, %v347
          %v351 = vrsqrt.pop %v257
          %v352 = vmul.f32 %v257, %v351
          %vm353 = vcmp.eq.f32.partialorder %v257, inf
          %v354 = vsel %vm353, %v257, %v352
          %vm355 = vcmp.eq.f32.partialorder %v257, 0.0
          %v356 = vand.u32 %v257, 2147483648
          %v357 = vsel %vm355, %v356, %v354
          %v358 = vrsqrt.pop %v260
          %v359 = vmul.f32 %v260, %v358
          %vm360 = vcmp.eq.f32.partialorder %v260, inf
          %v361 = vsel %vm360, %v260, %v359
          %vm362 = vcmp.eq.f32.partialorder %v260, 0.0
          %v363 = vand.u32 %v260, 2147483648
          %v364 = vsel %vm362, %v363, %v361
          %v365 = vrsqrt.pop %v263
          %v366 = vmul.f32 %v263, %v365
          %vm367 = vcmp.eq.f32.partialorder %v263, inf
          %v368 = vsel %vm367, %v263, %v366
          %vm369 = vcmp.eq.f32.partialorder %v263, 0.0
          %v370 = vand.u32 %v263, 2147483648
          %v371 = vsel %vm369, %v370, %v368
          %v372 = vrsqrt.pop %v266
          %v373 = vmul.f32 %v266, %v372
          %vm374 = vcmp.eq.f32.partialorder %v266, inf
          %v375 = vsel %vm374, %v266, %v373
          %vm376 = vcmp.eq.f32.partialorder %v266, 0.0
          %v377 = vand.u32 %v266, 2147483648
          %v378 = vsel %vm376, %v377, %v375
          %v379 = vmax.f32 %v273, 1e-08
          %v380 = vmax.f32 %v280, 1e-08
          %v381 = vmax.f32 %v287, 1e-08
          %v382 = vmax.f32 %v294, 1e-08
          %v383 = vmax.f32 %v301, 1e-08
          %v384 = vmax.f32 %v308, 1e-08
          %v385 = vmax.f32 %v315, 1e-08
          %v386 = vmax.f32 %v322, 1e-08
          %v387 = vmax.f32 %v329, 1e-08
          %v388 = vmax.f32 %v336, 1e-08
          %v389 = vmax.f32 %v343, 1e-08
          %v390 = vmax.f32 %v350, 1e-08
          %v391 = vmax.f32 %v357, 1e-08
          %v392 = vmax.f32 %v364, 1e-08
          %v393 = vmax.f32 %v371, 1e-08
          %v394 = vmax.f32 %v378, 1e-08
          %v395 = vrcp.pop %v379
          %v396 = vmul.f32 %v186, %v395
          %v397 = vrcp.pop %v380
          %v398 = vmul.f32 %v187, %v397
          %v399 = vrcp.pop %v381
          %v400 = vmul.f32 %v188, %v399
          %v401 = vrcp.pop %v382
          %v402 = vmul.f32 %v189, %v401
          %v403 = vrcp.pop %v383
          %v404 = vmul.f32 %v190, %v403
          %v405 = vrcp.pop %v384
          %v406 = vmul.f32 %v191, %v405
          %v407 = vrcp.pop %v385
          %v408 = vmul.f32 %v192, %v407
          %v409 = vrcp.pop %v386
          %v410 = vmul.f32 %v193, %v409
          %v411 = vrcp.pop %v387
          %v412 = vmul.f32 %v194, %v411
          %v413 = vrcp.pop %v388
          %v414 = vmul.f32 %v195, %v413
          %v415 = vrcp.pop %v389
          %v416 = vmul.f32 %v196, %v415
          %v417 = vrcp.pop %v390
          %v418 = vmul.f32 %v197, %v417
          %v419 = vrcp.pop %v391
          %v420 = vmul.f32 %v198, %v419
          %v421 = vrcp.pop %v392
          %v422 = vmul.f32 %v199, %v421
          %v423 = vrcp.pop %v393
          %v424 = vmul.f32 %v200, %v423
          %v425 = vrcp.pop %v394
          %v426 = vmul.f32 %v201, %v425
          %v427 = vpack.c.bf16 %v398, %v396
          %v428 = vpack.c.bf16 %v402, %v400
          %v429 = vpack.c.bf16 %v406, %v404
          %v430 = vpack.c.bf16 %v410, %v408
          %v431 = vpack.c.bf16 %v414, %v412
          %v432 = vpack.c.bf16 %v418, %v416
          %v433 = vpack.c.bf16 %v422, %v420
          %v434 = vpack.c.bf16 %v426, %v424
          %435 = vst.msk [vmem:[#allocation3] sm:$0xff] %vm218, %v427
          %436 = vst.msk [vmem:[#allocation3 + $0x8] sm:$0xff] %vm218, %v428
          %437 = vst.msk [vmem:[#allocation3 + $0x10] sm:$0xff] %vm218, %v429
          %438 = vst.msk [vmem:[#allocation3 + $0x18] sm:$0xff] %vm218, %v430
          %439 = vst.msk [vmem:[#allocation3 + $0x20] sm:$0xff] %vm218, %v431
          %440 = vst.msk [vmem:[#allocation3 + $0x28] sm:$0xff] %vm218, %v432
          %441 = vst.msk [vmem:[#allocation3 + $0x30] sm:$0xff] %vm218, %v433
          %442 = vst.msk [vmem:[#allocation3 + $0x38] sm:$0xff] %vm218, %v434
          %v443 = vmul.f32 %v396, %v412
          %v444 = vmul.f32 %v398, %v414
          %v445 = vmul.f32 %v400, %v416
          %v446 = vmul.f32 %v402, %v418
          %v447 = vmul.f32 %v404, %v420
          %v448 = vmul.f32 %v406, %v422
          %v449 = vmul.f32 %v408, %v424
          %v450 = vmul.f32 %v410, %v426
          %v451 = vsel %vm218, %v443, 0.0
          %v452 = vsel %vm218, %v444, 0.0
          %v453 = vadd.f32 %v451, %v452
          %v454 = vsel %vm218, %v445, 0.0
          %v455 = vadd.f32 %v453, %v454
          %v456 = vsel %vm218, %v446, 0.0
          %v457 = vadd.f32 %v455, %v456
          %v458 = vsel %vm218, %v447, 0.0
          %v459 = vadd.f32 %v457, %v458
          %v460 = vsel %vm218, %v448, 0.0
          %v461 = vadd.f32 %v459, %v460
          %v462 = vsel %vm218, %v449, 0.0
          %v463 = vadd.f32 %v461, %v462
          %v464 = vsel %vm218, %v450, 0.0
          %v465 = vadd.f32 %v463, %v464
          %466 = vadd.xlane.f32.xlu0 %v465
          %v467 = vpop.xlane.xlu0 %466
          %v468 = vrot.slane %v467, 4
          %v469 = vadd.f32 %v467, %v468
          %v470 = vrot.slane %v469, 2
          %v471 = vadd.f32 %v469, %v470
          %v472 = vrot.slane %v471, 1
          %v473 = vadd.f32 %v471, %v472
          %s474 = vtos %v473
          %v475 = vsub.f32 %v186, %v194
          %v476 = vsub.f32 %v187, %v195
          %v477 = vsub.f32 %v188, %v196
          %v478 = vsub.f32 %v189, %v197
          %v479 = vsub.f32 %v190, %v198
          %v480 = vsub.f32 %v191, %v199
          %v481 = vsub.f32 %v192, %v200
          %v482 = vsub.f32 %v193, %v201
          %s483 = scalar_lea.smem [#allocation2], 0
          %484 = sst [smem:[%s483]] 0.0
          %s485 = scalar_lea.smem [#allocation2], 1
          %486 = sst [smem:[%s485]] 0.0
          %s487 = smul.f32 %s474, 2.0
          %s488 = smul.f32 %s487, 10.0
          %s489 = scalar_lea.smem [#allocation2], 2
          %490 = sst [smem:[%s489]] %s488
          %v491 = vmul.f32 %v475, %v475
          %v492 = vmul.f32 %v476, %v476
          %v493 = vmul.f32 %v477, %v477
          %v494 = vmul.f32 %v478, %v478
          %v495 = vmul.f32 %v479, %v479
          %v496 = vmul.f32 %v480, %v480
          %v497 = vmul.f32 %v481, %v481
          %v498 = vmul.f32 %v482, %v482
          %v499 = vsel %vm218, %v491, 0.0
          %v500 = vsel %vm218, %v492, 0.0
          %v501 = vadd.f32 %v499, %v500
          %v502 = vsel %vm218, %v493, 0.0
          %v503 = vadd.f32 %v501, %v502
          %v504 = vsel %vm218, %v494, 0.0
          %v505 = vadd.f32 %v503, %v504
          %v506 = vsel %vm218, %v495, 0.0
          %v507 = vadd.f32 %v505, %v506
          %v508 = vsel %vm218, %v496, 0.0
          %v509 = vadd.f32 %v507, %v508
          %v510 = vsel %vm218, %v497, 0.0
          %v511 = vadd.f32 %v509, %v510
          %v512 = vsel %vm218, %v498, 0.0
          %v513 = vadd.f32 %v511, %v512
          %514 = vadd.xlane.f32.xlu0 %v513
          %v515 = vpop.xlane.xlu0 %514
          %v516 = vrot.slane %v515, 4
          %v517 = vadd.f32 %v515, %v516
          %v518 = vrot.slane %v517, 2
          %v519 = vadd.f32 %v517, %v518
          %v520 = vrot.slane %v519, 1
          %v521 = vadd.f32 %v519, %v520
          %s522 = vtos %v521
          %s523 = scalar_lea.smem [#allocation2], 3
          %524 = sst [smem:[%s523]] %s522
        $region36: #{tpu_custom_call.1} parent=31 // pred_fallthru
          _
        %s525 = smul.u32 %s15, 64
        %s526 = sshra.s32 %s525, 4
        %s527 = sand.u32 %s525, 15
        %s528 = smul.addr %s526, 8
        %s529 = scalar_lea.vmem [#allocation3], %s528
        %v530 = vld [vmem:[%s529] sm:$0xff]
        %v531 = vld [vmem:[%s529 + $0x8] sm:$0xff]
        %v532 = vld [vmem:[%s529 + $0x10] sm:$0xff]
        %v533 = vld [vmem:[%s529 + $0x18] sm:$0xff]
        %v534 = vld [vmem:[#allocation3] sm:$0xff]
        %v535 = vld [vmem:[#allocation3 + $0x8] sm:$0xff]
        %v536 = vld [vmem:[#allocation3 + $0x10] sm:$0xff]
        %v537 = vld [vmem:[#allocation3 + $0x18] sm:$0xff]
        %v538 = vld [vmem:[#allocation3 + $0x20] sm:$0xff]
        %v539 = vld [vmem:[#allocation3 + $0x28] sm:$0xff]
        %v540 = vld [vmem:[#allocation3 + $0x30] sm:$0xff]
        %v541 = vld [vmem:[#allocation3 + $0x38] sm:$0xff]
        %vm542 = vcmask 261120
        %v544 = vsel %vm542, %v530, 0
        %v547 = vsel %vm542, %v531, 0
        %v550 = vsel %vm542, %v532, 0
        %v553 = vsel %vm542, %v533, 0
        %v556 = vsel %vm542, %v534, 0
        %v559 = vsel %vm542, %v535, 0
        %v562 = vsel %vm542, %v536, 0
        %v565 = vsel %vm542, %v537, 0
        %v568 = vsel %vm542, %v538, 0
        %v571 = vsel %vm542, %v539, 0
        %v574 = vsel %vm542, %v540, 0
        %v577 = vsel %vm542, %v541, 0
        %579 = vmatprep.subr.bf16.mxu0 0
        %580 = vmatpush1.bf16.xpose.msra.mxu0 %v556
        %581 = vmatprep.subr.bf16.mxu0 0
        %582 = vmatpush1.bf16.xpose.msra.mxu0 %v559
        %583 = vmatprep.subr.bf16.mxu0 0
        %584 = vmatpush1.bf16.xpose.msra.mxu0 %v562
        %585 = vmatprep.subr.bf16.mxu0 0
        %586 = vmatpush1.bf16.xpose.msra.mxu0 %v565
        %587 = vmatprep.subr.bf16.mxu0 0
        %588 = vmatpush1.bf16.xpose.msra.mxu0 %v568
        %589 = vmatprep.subr.bf16.mxu0 0
        %590 = vmatpush1.bf16.xpose.msra.mxu0 %v571
        %591 = vmatprep.subr.bf16.mxu0 0
        %592 = vmatpush1.bf16.xpose.msra.mxu0 %v574
        %593 = vmatprep.subr.bf16.mxu0 0
        %594 = vmatpush1.bf16.xpose.msra.mxu0 %v577
        %595 = vmatprep.subr.bf16.mxu0 0
        %596 = vmatpush1.bf16.xpose.msra.mxu0 0
        %597 = vmatprep.subr.bf16.mxu0 0
        %598 = vmatpush1.bf16.xpose.msra.mxu0 0
        %599 = vmatprep.subr.bf16.mxu0 0
        %600 = vmatpush1.bf16.xpose.msra.mxu0 0
        %601 = vmatprep.subr.bf16.mxu0 0
        %602 = vmatpush1.bf16.xpose.msra.mxu0 0
        %603 = vmatprep.subr.bf16.mxu0 0
        %604 = vmatpush1.bf16.xpose.msra.mxu0 0
        %605 = vmatprep.subr.bf16.mxu0 0
        %606 = vmatpush1.bf16.xpose.msra.mxu0 0
        %607 = vmatprep.subr.bf16.mxu0 0
        %608 = vmatpush1.bf16.xpose.msra.mxu0 0
        %609 = vmatprep.subr.bf16.mxu0 0
        %610 = vmatpush1.bf16.xpose.msra.mxu0 0
        %611 = vmatprep.mubr.bf16.mxu0 0
        %612 = vmatmul.mubr.bf16.gmra.mrb[0].mxu0 %v544
        %v613 = vpop.f32.mrb[0].mxu0
        %v614 = vadd.f32 0.0, %v613
        %v615 = vpop.f32.mrb[0].mxu0
        %v616 = vpop.f32.mrb[0].mxu0
        %v617 = vadd.f32 0.0, %v616
        %v618 = vpop.f32.mrb[0].mxu0
        %619 = vmatprep.mubr.bf16.mxu0 0
        %620 = vmatmul.mubr.bf16.gmra.mrb[0].mxu0 %v547
        %v621 = vpop.f32.mrb[0].mxu0
        %v622 = vadd.f32 0.0, %v621
        %v623 = vpop.f32.mrb[0].mxu0
        %v624 = vpop.f32.mrb[0].mxu0
        %v625 = vadd.f32 0.0, %v624
        %v626 = vpop.f32.mrb[0].mxu0
        %627 = vmatprep.mubr.bf16.mxu0 0
        %628 = vmatmul.mubr.bf16.gmra.mrb[0].mxu0 %v550
        %v629 = vpop.f32.mrb[0].mxu0
        %v630 = vadd.f32 0.0, %v629
        %v631 = vpop.f32.mrb[0].mxu0
        %v632 = vpop.f32.mrb[0].mxu0
        %v633 = vadd.f32 0.0, %v632
        %v634 = vpop.f32.mrb[0].mxu0
        %635 = vmatprep.mubr.bf16.mxu0 0
        %636 = vmatmul.mubr.bf16.gmra.mrb[0].mxu0 %v553
        %v637 = vpop.f32.mrb[0].mxu0
        %v638 = vadd.f32 0.0, %v637
        %v639 = vpop.f32.mrb[0].mxu0
        %v640 = vpop.f32.mrb[0].mxu0
        %v641 = vadd.f32 0.0, %v640
        %v642 = vpop.f32.mrb[0].mxu0
        %643 = vdwg.mxu0
        %v644 = vsub.f32 %v614, 1.0
        %v645 = vsub.f32 %v617, 1.0
        %v646 = vsub.f32 %v622, 1.0
        %v647 = vsub.f32 %v625, 1.0
        %v648 = vsub.f32 %v630, 1.0
        %v649 = vsub.f32 %v633, 1.0
        %v650 = vsub.f32 %v638, 1.0
        %v651 = vsub.f32 %v641, 1.0
        %v652 = vmul.f32 %v644, 10.0
        %v653 = vmul.f32 %v645, 10.0
        %v654 = vmul.f32 %v646, 10.0
        %v655 = vmul.f32 %v647, 10.0
        %v656 = vmul.f32 %v648, 10.0
        %v657 = vmul.f32 %v649, 10.0
        %v658 = vmul.f32 %v650, 10.0
        %v659 = vmul.f32 %v651, 10.0
        %v660 = vmul.f32 %v652, 1.442695
        %v661 = vpow.pop %v660
        %v662 = vmul.f32 %v653, 1.442695
        %v663 = vpow.pop %v662
        %v664 = vmul.f32 %v654, 1.442695
        %v665 = vpow.pop %v664
        %v666 = vmul.f32 %v655, 1.442695
        %v667 = vpow.pop %v666
        %v668 = vmul.f32 %v656, 1.442695
        %v669 = vpow.pop %v668
        %v670 = vmul.f32 %v657, 1.442695
        %v671 = vpow.pop %v670
        %v672 = vmul.f32 %v658, 1.442695
        %v673 = vpow.pop %v672
        %v674 = vmul.f32 %v659, 1.442695
        %v675 = vpow.pop %v674
        %v676 = vlaneseq
        %v677 = vand.u32 %v676, 127
        %v678 = vlaneseq
        %v679 = vshrl.u32 %v678, 7
        %v680 = vadd.s32 %v679, 8
        %v681 = vadd.s32 %v679, 16
        %v682 = vadd.s32 %v679, 24
        %v683 = vadd.s32 %v679, 32
        %v684 = vadd.s32 %v679, 40
        %v685 = vadd.s32 %v679, 48
        %v686 = vadd.s32 %v679, 56
        %v687 = vstv %s525
        %v688 = vadd.s32 %v679, %v687
        %v689 = vadd.s32 %v680, %v687
        %v690 = vadd.s32 %v681, %v687
        %v691 = vadd.s32 %v682, %v687
        %v692 = vadd.s32 %v683, %v687
        %v693 = vadd.s32 %v684, %v687
        %v694 = vadd.s32 %v685, %v687
        %v695 = vadd.s32 %v686, %v687
        %vm696 = vcmp.eq.s32.totalorder %v677, %v688
        %vm697 = vcmp.eq.s32.totalorder %v677, %v689
        %vm698 = vcmp.eq.s32.totalorder %v677, %v690
        %vm699 = vcmp.eq.s32.totalorder %v677, %v691
        %vm700 = vcmp.eq.s32.totalorder %v677, %v692
        %vm701 = vcmp.eq.s32.totalorder %v677, %v693
        %vm702 = vcmp.eq.s32.totalorder %v677, %v694
        %vm703 = vcmp.eq.s32.totalorder %v677, %v695
        %v704 = vsel %vm696, 0.0, %v661
        %v705 = vsel %vm697, 0.0, %v663
        %v706 = vsel %vm698, 0.0, %v665
        %v707 = vsel %vm699, 0.0, %v667
        %v708 = vsel %vm700, 0.0, %v669
        %v709 = vsel %vm701, 0.0, %v671
        %v710 = vsel %vm702, 0.0, %v673
        %v711 = vsel %vm703, 0.0, %v675
        %712 = vadd.xlane.f32.xlu0 %v704
        %v713 = vpop.xlane.xlu0 %712
        %714 = vadd.xlane.f32.xlu0 %v705
        %v715 = vpop.xlane.xlu0 %714
        %716 = vadd.xlane.f32.xlu0 %v706
        %v717 = vpop.xlane.xlu0 %716
        %718 = vadd.xlane.f32.xlu0 %v707
        %v719 = vpop.xlane.xlu0 %718
        %720 = vadd.xlane.f32.xlu0 %v708
        %v721 = vpop.xlane.xlu0 %720
        %722 = vadd.xlane.f32.xlu0 %v709
        %v723 = vpop.xlane.xlu0 %722
        %724 = vadd.xlane.f32.xlu0 %v710
        %v725 = vpop.xlane.xlu0 %724
        %726 = vadd.xlane.f32.xlu0 %v711
        %v727 = vpop.xlane.xlu0 %726
        %v728 = vlog2.pop %v713
        %v729 = vmul.f32 %v728, 0.6931472
        %v730 = vlog2.pop %v715
        %v731 = vmul.f32 %v730, 0.6931472
        %v732 = vlog2.pop %v717
        %v733 = vmul.f32 %v732, 0.6931472
        %v734 = vlog2.pop %v719
        %v735 = vmul.f32 %v734, 0.6931472
        %v736 = vlog2.pop %v721
        %v737 = vmul.f32 %v736, 0.6931472
        %v738 = vlog2.pop %v723
        %v739 = vmul.f32 %v738, 0.6931472
        %v740 = vlog2.pop %v725
        %v741 = vmul.f32 %v740, 0.6931472
        %v742 = vlog2.pop %v727
        %v743 = vmul.f32 %v742, 0.6931472
        %v744 = vadd.f32 %v729, 10.0
        %v745 = vadd.f32 %v731, 10.0
        %v746 = vadd.f32 %v733, 10.0
        %v747 = vadd.f32 %v735, 10.0
        %v748 = vadd.f32 %v737, 10.0
        %v749 = vadd.f32 %v739, 10.0
        %v750 = vadd.f32 %v741, 10.0
        %v751 = vadd.f32 %v743, 10.0
        %s752 = sld [smem:[#allocation2 + $0x1]]
        %vm753 = vcmask 7168
        %v754 = vsel %vm753, %v744, 0.0
        %v755 = vsel %vm753, %v745, 0.0
        %v756 = vadd.f32 %v754, %v755
        %v757 = vsel %vm753, %v746, 0.0
        %v758 = vadd.f32 %v756, %v757
        %v759 = vsel %vm753, %v747, 0.0
        %v760 = vadd.f32 %v758, %v759
        %v761 = vsel %vm753, %v748, 0.0
        %v762 = vadd.f32 %v760, %v761
        %v763 = vsel %vm753, %v749, 0.0
        %v764 = vadd.f32 %v762, %v763
        %v765 = vsel %vm753, %v750, 0.0
        %v766 = vadd.f32 %v764, %v765
        %v767 = vsel %vm753, %v751, 0.0
        %v768 = vadd.f32 %v766, %v767
        %769 = vadd.xlane.f32.xlu0 %v768
        %v770 = vpop.xlane.xlu0 %769
        %v771 = vrot.slane %v770, 4
        %v772 = vadd.f32 %v770, %v771
        %v773 = vrot.slane %v772, 2
        %v774 = vadd.f32 %v772, %v773
        %v775 = vrot.slane %v774, 1
        %v776 = vadd.f32 %v774, %v775
        %s777 = vtos %v776
        %s778 = sadd.f32 %s752, %s777
        %s779 = scalar_lea.smem [#allocation2], 1
        %780 = sst [smem:[%s779]] %s778
        %v781 = vld [vmem:[%s173] sm:$0xff]
        %v782 = vld [vmem:[%s173 + $0x8] sm:$0xff]
        %v783 = vld [vmem:[%s173 + $0x10] sm:$0xff]
        %v784 = vld [vmem:[%s173 + $0x18] sm:$0xff]
        %v785 = vld [vmem:[%s173 + $0x20] sm:$0xff]
        %v786 = vld [vmem:[%s173 + $0x28] sm:$0xff]
        %v787 = vld [vmem:[%s173 + $0x30] sm:$0xff]
        %v788 = vld [vmem:[%s173 + $0x38] sm:$0xff]
        %v789 = vld [vmem:[%s179] sm:$0xff]
        %v790 = vld [vmem:[%s179 + $0x8] sm:$0xff]
        %v791 = vld [vmem:[%s179 + $0x10] sm:$0xff]
        %v792 = vld [vmem:[%s179 + $0x18] sm:$0xff]
        %v793 = vld [vmem:[%s179 + $0x20] sm:$0xff]
        %v794 = vld [vmem:[%s179 + $0x28] sm:$0xff]
        %v795 = vld [vmem:[%s179 + $0x30] sm:$0xff]
        %v796 = vld [vmem:[%s179 + $0x38] sm:$0xff]
        %v797 = vlog2.pop %v781
        %v798 = vmul.f32 %v797, 0.6931472
        %v799 = vlog2.pop %v782
        %v800 = vmul.f32 %v799, 0.6931472
        %v801 = vlog2.pop %v783
        %v802 = vmul.f32 %v801, 0.6931472
        %v803 = vlog2.pop %v784
        %v804 = vmul.f32 %v803, 0.6931472
        %v805 = vlog2.pop %v785
        %v806 = vmul.f32 %v805, 0.6931472
        %v807 = vlog2.pop %v786
        %v808 = vmul.f32 %v807, 0.6931472
        %v809 = vlog2.pop %v787
        %v810 = vmul.f32 %v809, 0.6931472
        %v811 = vlog2.pop %v788
        %v812 = vmul.f32 %v811, 0.6931472
        %v813 = vmax.f32 %v798, -100.0
        %v814 = vmax.f32 %v800, -100.0
        %v815 = vmax.f32 %v802, -100.0
        %v816 = vmax.f32 %v804, -100.0
        %v817 = vmax.f32 %v806, -100.0
        %v818 = vmax.f32 %v808, -100.0
        %v819 = vmax.f32 %v810, -100.0
        %v820 = vmax.f32 %v812, -100.0
        %v821 = vsub.f32 1.0, %v781
        %v822 = vsub.f32 1.0, %v782
        %v823 = vsub.f32 1.0, %v783
        %v824 = vsub.f32 1.0, %v784
        %v825 = vsub.f32 1.0, %v785
        %v826 = vsub.f32 1.0, %v786
        %v827 = vsub.f32 1.0, %v787
        %v828 = vsub.f32 1.0, %v788
        %v829 = vlog2.pop %v821
        %v830 = vmul.f32 %v829, 0.6931472
        %v831 = vlog2.pop %v822
        %v832 = vmul.f32 %v831, 0.6931472
        %v833 = vlog2.pop %v823
        %v834 = vmul.f32 %v833, 0.6931472
        %v835 = vlog2.pop %v824
        %v836 = vmul.f32 %v835, 0.6931472
        %v837 = vlog2.pop %v825
        %v838 = vmul.f32 %v837, 0.6931472
        %v839 = vlog2.pop %v826
        %v840 = vmul.f32 %v839, 0.6931472
        %v841 = vlog2.pop %v827
        %v842 = vmul.f32 %v841, 0.6931472
        %v843 = vlog2.pop %v828
        %v844 = vmul.f32 %v843, 0.6931472
        %v845 = vmax.f32 %v830, -100.0
        %v846 = vmax.f32 %v832, -100.0
        %v847 = vmax.f32 %v834, -100.0
        %v848 = vmax.f32 %v836, -100.0
        %v849 = vmax.f32 %v838, -100.0
        %v850 = vmax.f32 %v840, -100.0
        %v851 = vmax.f32 %v842, -100.0
        %v852 = vmax.f32 %v844, -100.0
        %s853 = sld [smem:[#allocation2]]
        %v854 = vmul.f32 %v789, %v813
        %v855 = vmul.f32 %v790, %v814
        %v856 = vmul.f32 %v791, %v815
        %v857 = vmul.f32 %v792, %v816
        %v858 = vmul.f32 %v793, %v817
        %v859 = vmul.f32 %v794, %v818
        %v860 = vmul.f32 %v795, %v819
        %v861 = vmul.f32 %v796, %v820
        %v862 = vsub.f32 1.0, %v789
        %v863 = vsub.f32 1.0, %v790
        %v864 = vsub.f32 1.0, %v791
        %v865 = vsub.f32 1.0, %v792
        %v866 = vsub.f32 1.0, %v793
        %v867 = vsub.f32 1.0, %v794
        %v868 = vsub.f32 1.0, %v795
        %v869 = vsub.f32 1.0, %v796
        %v870 = vmul.f32 %v862, %v845
        %v871 = vmul.f32 %v863, %v846
        %v872 = vmul.f32 %v864, %v847
        %v873 = vmul.f32 %v865, %v848
        %v874 = vmul.f32 %v866, %v849
        %v875 = vmul.f32 %v867, %v850
        %v876 = vmul.f32 %v868, %v851
        %v877 = vmul.f32 %v869, %v852
        %v878 = vadd.f32 %v854, %v870
        %v879 = vadd.f32 %v855, %v871
        %v880 = vadd.f32 %v856, %v872
        %v881 = vadd.f32 %v857, %v873
        %v882 = vadd.f32 %v858, %v874
        %v883 = vadd.f32 %v859, %v875
        %v884 = vadd.f32 %v860, %v876
        %v885 = vadd.f32 %v861, %v877
        %v886 = vsub.f32 0.0, %v878
        %v887 = vsub.f32 0.0, %v879
        %v888 = vsub.f32 0.0, %v880
        %v889 = vsub.f32 0.0, %v881
        %v890 = vsub.f32 0.0, %v882
        %v891 = vsub.f32 0.0, %v883
        %v892 = vsub.f32 0.0, %v884
        %v893 = vsub.f32 0.0, %v885
        %vm894 = vcmask 523264
        %v895 = vsel %vm894, %v886, 0.0
        %v896 = vsel %vm894, %v887, 0.0
        %v897 = vadd.f32 %v895, %v896
        %v898 = vsel %vm894, %v888, 0.0
        %v899 = vadd.f32 %v897, %v898
        %v900 = vsel %vm894, %v889, 0.0
        %v901 = vadd.f32 %v899, %v900
        %v902 = vsel %vm894, %v890, 0.0
        %v903 = vadd.f32 %v901, %v902
        %v904 = vsel %vm894, %v891, 0.0
        %v905 = vadd.f32 %v903, %v904
        %v906 = vsel %vm894, %v892, 0.0
        %v907 = vadd.f32 %v905, %v906
        %v908 = vsel %vm894, %v893, 0.0
        %v909 = vadd.f32 %v907, %v908
        %910 = vadd.xlane.f32.xlu0 %v909
        %v911 = vpop.xlane.xlu0 %910
        %v912 = vrot.slane %v911, 4
        %v913 = vadd.f32 %v911, %v912
        %v914 = vrot.slane %v913, 2
        %v915 = vadd.f32 %v913, %v914
        %v916 = vrot.slane %v915, 1
        %v917 = vadd.f32 %v915, %v916
        %s918 = vtos %v917
        %s919 = sadd.f32 %s853, %s918
        %s920 = scalar_lea.smem [#allocation2], 0
        %921 = sst [smem:[%s920]] %s919
        %p922 = scmp.eq.s32.totalorder %s15, 1
        // Predicated region
        $region37: #{tpu_custom_call.1} parent=31 // pred_check
          %p923 = pneg %p922
        $region38: #{tpu_custom_call.1} parent=31 // pred_check_branch
          %925 = sbr.rel (%p923) target = $region40
        $region39: #{tpu_custom_call.1} parent=31 // pred_region
          %s926 = sld [smem:[#allocation2]]
          %v927 = vrcp.pop 8192.0
          %s928 = vtos %v927
          %s929 = smul.f32 %s926, %s928
          %s930 = sld [smem:[#allocation2 + $0x1]]
          %s931 = sld [smem:[#allocation2 + $0x2]]
          %s932 = ssub.f32 %s930, %s931
          %v933 = vrcp.pop 128.0
          %s934 = vtos %v933
          %s935 = smul.f32 %s932, %s934
          %s936 = sld [smem:[#allocation2 + $0x3]]
          %v937 = vrcp.pop 64.0
          %s938 = vtos %v937
          %s939 = smul.f32 %s936, %s938
          %s940 = sadd.f32 %s929, %s935
          %s941 = sadd.f32 %s940, %s939
          %s942 = scalar_lea.smem [#allocation4], 0
          %943 = sst [smem:[%s942]] %s941
          %s944 = scalar_lea.smem [#allocation4], 1
          %945 = sst [smem:[%s944]] %s935
          %s946 = scalar_lea.smem [#allocation4], 2
          %947 = sst [smem:[%s946]] %s929
          %s948 = scalar_lea.smem [#allocation4], 3
          %949 = sst [smem:[%s948]] %s939
        $region40: #{tpu_custom_call.1} parent=31 // pred_fallthru
          _
        // Predicated region
        $region41: #{tpu_custom_call.1} parent=31 // pred_check
          %p950 = pneg %p101
        $region42: #{tpu_custom_call.1} parent=31 // pred_check_branch
          %952 = sbr.rel (%p950) target = $region44
        $region43: #{tpu_custom_call.1} parent=31 // pred_region
          %s954 = ssub.s32 16, 16
          %955 = vsyncadd [#allocation5], %s954
          %958 = dma.smem_to_hbm [#allocation4], 16, %s3, [#allocation5]
        $region44: #{tpu_custom_call.1} parent=31 // pred_fallthru
          _
        // Predicated region
        $region45: #{tpu_custom_call.1} parent=31 // pred_check
          %p959 = pneg %p101
        $region46: #{tpu_custom_call.1} parent=31 // pred_check_branch
          %961 = sbr.rel (%p959) target = $region48
        $region47: #{tpu_custom_call.1} parent=31 // pred_region
          %962 = dma.done [#allocation5], 16
        $region48: #{tpu_custom_call.1} parent=31 // pred_fallthru
          _
        %963 = sfence
      $region32: #{tpu_custom_call.1} parent=5 // pred_fallthru
        _
      %p964 = scmp.le.s32.totalorder 2, %s10
      // Predicated region
      $region49: #{tpu_custom_call.1} parent=5 // pred_check
        %p965 = pneg %p964
      $region50: #{tpu_custom_call.1} parent=5 // pred_check_branch
        %967 = sbr.rel (%p965) target = $region52
      $region51: #{tpu_custom_call.1} parent=5 // pred_region
        %s968 = ssub.s32 %s10, 2
      $region52: #{tpu_custom_call.1} parent=5 // pred_fallthru
        _
    $region6: #{tpu_custom_call.1} parent=1 // loop_footer
      %s14 = sadd.s32 1, %s10
    $region7: #{tpu_custom_call.1} parent=1 // loop_footer_branch
      %9 = sbr.rel target = $region3
    $region8: #{tpu_custom_call.1} parent=1 // loop_exit
      _
    %969 = vsyncpa [#allocation5], 1
    %s970 = scalar_lea.sflag [#allocation5], 1
    %971 = vsyncpa %s970, 1

</llo_original>
